<compile_context>
chip_gen: v5e
topology: v5e:2x2
jax: 0.10.0
libtpu: 0.0.40
codegen_flags: <defaults>
</compile_context>

<pallas_src>
import functools

import jax
import jax.numpy as jnp
from jax.experimental import pallas as pl
from jax.experimental.pallas import tpu as pltpu

LANES = 128
SUBLANES = 8
_MAX_TILE_BYTES = 4 * 1024 * 1024      # per-input tile cap (HBM roofline plateau)
_VMEM_LIMIT_BYTES = 32 * 1024 * 1024   # 2 in x 2 buf x 4 MiB = 16 MiB fits everywhere


def _charbonnier_sum_kernel(x_ref, y_ref, o_ref, *, eps, block_rows):
    i = pl.program_id(1)

    @pl.when(i == 0)
    def _():
        o_ref[...] = jnp.zeros_like(o_ref)

    d = x_ref[...].astype(jnp.float32) - y_ref[...].astype(jnp.float32)
    val = jnp.sqrt(d * d + jnp.float32(eps * eps))
    # Partial reduction into a vreg-shaped (8, 128) accumulator: the reshape
    # does not cross (8,128) tile boundaries, so this is pure VPU vreg adds.
    o_ref[...] += jnp.sum(
        val.reshape(block_rows // SUBLANES, SUBLANES, LANES), axis=0
    )


def charbonnier_loss(x, y, eps=1e-3, block_rows=4096):
    assert x.shape == y.shape, "x and y must have identical shapes"
    n = x.size
    xf = x.reshape(-1)
    yf = y.reshape(-1)

    # Packed-sublane row multiple (8 for f32, 16 for bf16, 32 for int8/fp8) so
    # the input blocks match Mosaic's packed tiling (no relayout / masked loads).
    min_isz = min(xf.dtype.itemsize, yf.dtype.itemsize)
    max_isz = max(xf.dtype.itemsize, yf.dtype.itemsize)
    mult = SUBLANES * max(1, 4 // int(min_isz))
    br_cap = max(mult, (_MAX_TILE_BYTES // (LANES * int(max_isz))) // mult * mult)

    n_rows = n // LANES  # number of complete 128-lane rows
    total = jnp.float32(0.0)
    n_main = 0

    # ---- Adaptive tile choice -------------------------------------------------
    br = 0
    n_tiles = 0
    if n_rows >= mult:
        target = max(mult, min((int(block_rows) // mult) * mult, br_cap))
        n_tiles = -(-n_rows // target)          # ceil => br <= target (<= br_cap)
        if n_tiles >= 2:
            n_tiles += n_tiles & 1              # even => both TensorCores on v7x
        br = (n_rows // n_tiles) // mult * mult
        if br < mult:                           # too few rows to split usefully
            n_tiles = 1
            br = (n_rows // mult) * mult

    if br >= mult:
        n_splits = 2 if n_tiles >= 2 else 1
        tiles_per_split = n_tiles // n_splits
        n_main = n_tiles * br * LANES

        xm = xf[:n_main].reshape(n_tiles * br, LANES)
        ym = yf[:n_main].reshape(n_tiles * br, LANES)

        kernel = functools.partial(
            _charbonnier_sum_kernel, eps=float(eps), block_rows=br
        )

        in_map = lambda c, i: (c * tiles_per_split + i, 0)
        cost = pl.CostEstimate(
            flops=4 * n_main,
            transcendentals=n_main,
            bytes_accessed=n_main * (xm.dtype.itemsize + ym.dtype.itemsize)
            + n_splits * SUBLANES * LANES * 4,
        )

        partials = pl.pallas_call(
            kernel,
            out_shape=jax.ShapeDtypeStruct((n_splits, SUBLANES, LANES), jnp.float32),
            grid_spec=pltpu.PrefetchScalarGridSpec(
                num_scalar_prefetch=0,
                grid=(n_splits, tiles_per_split),
                in_specs=[
                    pl.BlockSpec((br, LANES), in_map),
                    pl.BlockSpec((br, LANES), in_map),
                ],
                # Same output block across the (arbitrary) reduction axis ->
                # resident accumulator; distinct block per parallel split.
                out_specs=pl.BlockSpec((None, SUBLANES, LANES), lambda c, i: (c, 0, 0)),
            ),
            compiler_params=pltpu.CompilerParams(
                dimension_semantics=("parallel", "arbitrary"),
                vmem_limit_bytes=_VMEM_LIMIT_BYTES,
            ),
            cost_estimate=cost,
        )(xm, ym)
        total = jnp.sum(partials, dtype=jnp.float32)

    if n_main < n:
        # < one tile of remainder: tiny JAX reduction, avoids any full-array
        # pad/copy and any in-kernel masking.
        dt = xf[n_main:].astype(jnp.float32) - yf[n_main:].astype(jnp.float32)
        total = total + jnp.sum(jnp.sqrt(dt * dt + jnp.float32(eps * eps)))

    return total / jnp.float32(n)


if __name__ == "__main__":
    key = jax.random.PRNGKey(0)
    kx, ky = jax.random.split(key)
    # NCHW, small shapes: batch=2, channels=4, spatial=16x16
    x = jax.random.normal(kx, (2, 4, 16, 16), dtype=jnp.float32)
    y = jax.random.normal(ky, (2, 4, 16, 16), dtype=jnp.float32)

    loss = charbonnier_loss(x, y, eps=1e-3)
    loss = jax.block_until_ready(loss)

    # Pure-JAX reference check
    diff = x - y
    ref = jnp.mean(jnp.sqrt(diff * diff + 1e-3 * 1e-3))
    assert jnp.allclose(loss, ref, rtol=1e-5, atol=1e-6), (loss, ref)

    print("KERNEL_OK")
</pallas_src>

<mosaic_0001>
module attributes {stable_mosaic.version = 11 : i64} {
  func.func @_charbonnier_sum_kernel(%arg0: i32, %arg1: i32, %arg2: memref<16x128xf32, #tpu.memory_space<vmem>>, %arg3: memref<16x128xf32, #tpu.memory_space<vmem>>, %arg4: memref<1x8x128xf32, #tpu.memory_space<vmem>>) attributes {dimension_semantics = [#tpu.dimension_semantics<parallel>, #tpu.dimension_semantics<arbitrary>], iteration_bounds = array<i64: 1, 1>, scalar_prefetch = 0 : i64, scratch_operands = 0 : i64, tpu.core_type = #tpu.core_type<tc>, window_params = [{transform_indices = @transform_0, window_bounds = array<i64: 16, 128>}, {transform_indices = @transform_1, window_bounds = array<i64: 16, 128>}, {transform_indices = @transform_2, window_bounds = array<i64: 1, 8, 128>}]} {
    %c0_i32 = arith.constant 0 : i32
    %0 = arith.cmpi eq, %arg1, %c0_i32 : i32
    %1 = arith.extui %0 : i1 to i32
    %c0_i32_0 = arith.constant 0 : i32
    %2 = arith.cmpi ne, %1, %c0_i32_0 : i32
    scf.if %2 {
      %cst_11 = arith.constant 0.000000e+00 : f32
      %18 = vector.broadcast %cst_11 : f32 to vector<8x128xf32>
      %c0_12 = arith.constant 0 : index
      %c0_13 = arith.constant 0 : index
      %c0_14 = arith.constant 0 : index
      %19 = vector.load %arg4[%c0_12, %c0_13, %c0_14] : memref<1x8x128xf32, #tpu.memory_space<vmem>>, vector<1x8x128xf32>
      %20 = vector.shape_cast %19 : vector<1x8x128xf32> to vector<8x128xf32>
      %21 = vector.shape_cast %18 : vector<8x128xf32> to vector<1x8x128xf32>
      tpu.vector_store %arg4[%c0_12, %c0_13, %c0_14], %21 {strides = array<i32>} : memref<1x8x128xf32, #tpu.memory_space<vmem>>, vector<1x8x128xf32>,
    } else {
    }
    %c0 = arith.constant 0 : index
    %c0_1 = arith.constant 0 : index
    %3 = vector.load %arg2[%c0, %c0_1] : memref<16x128xf32, #tpu.memory_space<vmem>>, vector<16x128xf32>
    %c0_2 = arith.constant 0 : index
    %c0_3 = arith.constant 0 : index
    %4 = vector.load %arg3[%c0_2, %c0_3] : memref<16x128xf32, #tpu.memory_space<vmem>>, vector<16x128xf32>
    %5 = arith.subf %3, %4 : vector<16x128xf32>
    %6 = arith.mulf %5, %5 : vector<16x128xf32>
    %cst = arith.constant 9.99999997E-7 : f32
    %7 = vector.broadcast %cst : f32 to vector<16x128xf32>
    %8 = arith.addf %6, %7 : vector<16x128xf32>
    %9 = math.sqrt %8 : vector<16x128xf32>
    %c0_4 = arith.constant 0 : index
    %c0_5 = arith.constant 0 : index
    %c0_6 = arith.constant 0 : index
    %10 = vector.load %arg4[%c0_4, %c0_5, %c0_6] : memref<1x8x128xf32, #tpu.memory_space<vmem>>, vector<1x8x128xf32>
    %11 = vector.shape_cast %10 : vector<1x8x128xf32> to vector<8x128xf32>
    %12 = vector.shape_cast %9 : vector<16x128xf32> to vector<2x8x128xf32>
    %cst_7 = arith.constant dense<0.000000e+00> : vector<8x128xf32>
    %13 = vector.multi_reduction <add>, %12, %cst_7 [0] : vector<2x8x128xf32> to vector<8x128xf32>
    %14 = arith.addf %11, %13 : vector<8x128xf32>
    %c0_8 = arith.constant 0 : index
    %c0_9 = arith.constant 0 : index
    %c0_10 = arith.constant 0 : index
    %15 = vector.load %arg4[%c0_8, %c0_9, %c0_10] : memref<1x8x128xf32, #tpu.memory_space<vmem>>, vector<1x8x128xf32>
    %16 = vector.shape_cast %15 : vector<1x8x128xf32> to vector<8x128xf32>
    %17 = vector.shape_cast %14 : vector<8x128xf32> to vector<1x8x128xf32>
    tpu.vector_store %arg4[%c0_8, %c0_9, %c0_10], %17 {strides = array<i32>} : memref<1x8x128xf32, #tpu.memory_space<vmem>>, vector<1x8x128xf32>,
    return
  }
  func.func @transform_0(%arg0: i32, %arg1: i32) -> (i32, i32) {
    %c1_i32 = arith.constant 1 : i32
    %0 = arith.muli %arg0, %c1_i32 : i32
    %1 = arith.addi %0, %arg1 : i32
    %c0_i32 = arith.constant 0 : i32
    %c0_i32_0 = arith.constant 0 : i32
    return %1, %c0_i32 : i32, i32
  }
  func.func @transform_1(%arg0: i32, %arg1: i32) -> (i32, i32) {
    %c1_i32 = arith.constant 1 : i32
    %0 = arith.muli %arg0, %c1_i32 : i32
    %1 = arith.addi %0, %arg1 : i32
    %c0_i32 = arith.constant 0 : i32
    %c0_i32_0 = arith.constant 0 : i32
    return %1, %c0_i32 : i32, i32
  }
  func.func @transform_2(%arg0: i32, %arg1: i32) -> (i32, i32, i32) {
    %c0_i32 = arith.constant 0 : i32
    %c0_i32_0 = arith.constant 0 : i32
    %c0_i32_1 = arith.constant 0 : i32
    return %arg0, %c0_i32, %c0_i32_0 : i32, i32, i32
  }
}

</mosaic_0001>

<llo_original>
// kernel: tpu_custom_call.1
$region0: #{tpu_custom_call.1}
  #allocation0 [shape = 'u32[]', space=smem, size = 0x4, offset = 0x4, fixed_abs, tag = 'smem constant byte address 0x4 - core index']
  #allocation1 [shape = 'u32[72,128]{1,0:T(1,128)}', space=vmem, size = 0x9000, scoped, tag = 'internal scratch']
  %s0 = inlined_call_operand.hbm [shape: f32[16,128], index: 0, kind: input, shape index: {}]
  %s1 = inlined_call_operand.hbm [shape: f32[16,128], index: 1, kind: input, shape index: {}]
  %s2 = inlined_call_operand.hbm [shape: f32[1,8,128], index: 2, kind: output, shape index: {}]
  %s3 = sld [smem:[#allocation0]]
  $region30: #{tpu_custom_call.1} parent=0
    _
  %s5 = ssub.s32 1, %s3
  %s6 = scalar_select 0, %s5, %s3
  $region1: #{tpu_custom_call.1} parent=0
    #allocation2 [shape = 'u8[8192]{0}', space=vmem, size = 0x2000, scoped, tag = 'input window, operand 0, single buffered']
    #allocation3 [shape = 's32[1]{0}', space=sflag, size = 0x4, scoped, tag = 'scoped memory for tpu_custom_call.1']
    #allocation4 [shape = 's32[1]{0}', space=sflag, size = 0x4, scoped, tag = 'scoped memory for tpu_custom_call.1']
    #allocation5 [shape = 'u8[8192]{0}', space=vmem, size = 0x2000, scoped, tag = 'input window, operand 1, single buffered']
    #allocation6 [shape = 's32[1]{0}', space=sflag, size = 0x4, scoped, tag = 'scoped memory for tpu_custom_call.1']
    #allocation7 [shape = 'u8[4096]{0}', space=vmem, size = 0x1000, scoped, tag = 'output window, operand 0, single buffered']
    %7 = vsyncpa [#allocation3], 0
    %8 = vsyncpa [#allocation6], 0
    %9 = vsyncpa [#allocation4], 0
    // Predicated region
    $region2: #{tpu_custom_call.1} parent=1 // pred_check
      _
    $region3: #{tpu_custom_call.1} parent=1 // pred_check_branch
      %11 = sbr.rel (0) target = $region5
    $region4: #{tpu_custom_call.1} parent=1 // pred_region
      %s12 = sadd.s32 0, 0
      %s13 = smul.u32 2, %s12
      %15 = vsyncadd [#allocation3], 0
      %s16 = smul.addr %s13, 8
      %s17 = scalar_lea.hbm %s0, %s16
      %s18 = sshll.u32 %s17, 4
      %s19 = int_to_ptr.hbm [resolvable:$true] %s18
      %s20 = sshll.u32 [#allocation2], 4
      %s21 = int_to_ptr.vmem [resolvable:$true] %s20
      %26 = dma.hbm_to_vmem [thread:$0]  %s19, 256, %s21, [#allocation3], 128, 128, 8
    $region5: #{tpu_custom_call.1} parent=1 // pred_fallthru
      _
    // Predicated region
    $region6: #{tpu_custom_call.1} parent=1 // pred_check
      _
    $region7: #{tpu_custom_call.1} parent=1 // pred_check_branch
      %28 = sbr.rel (0) target = $region9
    $region8: #{tpu_custom_call.1} parent=1 // pred_region
      %s29 = sadd.s32 0, 0
      %s30 = smul.u32 2, %s29
      %32 = vsyncadd [#allocation6], 0
      %s33 = smul.addr %s30, 8
      %s34 = scalar_lea.hbm %s1, %s33
      %s35 = sshll.u32 %s34, 4
      %s36 = int_to_ptr.hbm [resolvable:$true] %s35
      %s37 = sshll.u32 [#allocation5], 4
      %s38 = int_to_ptr.vmem [resolvable:$true] %s37
      %43 = dma.hbm_to_vmem [thread:$0]  %s36, 256, %s38, [#allocation6], 128, 128, 8
    $region9: #{tpu_custom_call.1} parent=1 // pred_fallthru
      _
    // Predicated region
    $region10: #{tpu_custom_call.1} parent=1 // pred_check
      _
    $region11: #{tpu_custom_call.1} parent=1 // pred_check_branch
      %45 = sbr.rel (0) target = $region13
    $region12: #{tpu_custom_call.1} parent=1 // pred_region
      %47 = dma.done [#allocation3], 256
    $region13: #{tpu_custom_call.1} parent=1 // pred_fallthru
      _
    // Predicated region
    $region14: #{tpu_custom_call.1} parent=1 // pred_check
      _
    $region15: #{tpu_custom_call.1} parent=1 // pred_check_branch
      %49 = sbr.rel (0) target = $region17
    $region16: #{tpu_custom_call.1} parent=1 // pred_region
      %51 = dma.done [#allocation6], 256
    $region17: #{tpu_custom_call.1} parent=1 // pred_fallthru
      _
    %s52 = sadd.s32 0, 0
    %s53 = smul.u32 2, %s52
    %s54 = sadd.s32 0, 0
    %s55 = smul.u32 2, %s54
    %p56 = scmp.eq.s32.totalorder 0, 0
    // Predicated region
    $region18: #{tpu_custom_call.1} parent=1 // pred_check
      %p57 = pneg %p56
    $region19: #{tpu_custom_call.1} parent=1 // pred_check_branch
      %59 = sbr.rel (%p57) target = $region21
    $region20: #{tpu_custom_call.1} parent=1 // pred_region
      %60 = vst [vmem:[#allocation7] sm:$0xff] 0.0
    $region21: #{tpu_custom_call.1} parent=1 // pred_fallthru
      _
    %v61 = vld [vmem:[#allocation2] sm:$0xff]
    %v62 = vld [vmem:[#allocation2 + $0x8] sm:$0xff]
    %v63 = vld [vmem:[#allocation5] sm:$0xff]
    %v64 = vld [vmem:[#allocation5 + $0x8] sm:$0xff]
    %v65 = vsub.f32 %v61, %v63
    %v66 = vsub.f32 %v62, %v64
    %v67 = vmul.f32 %v65, %v65
    %v68 = vmul.f32 %v66, %v66
    %v69 = vadd.f32 %v67, 1e-06
    %v70 = vadd.f32 %v68, 1e-06
    %v71 = vrsqrt.pop %v69
    %v72 = vmul.f32 %v71, %v69
    %v73 = vmul.f32 %v72, %v71
    %v74 = vmul.f32 0.5, %v73
    %v75 = vsub.f32 1.5, %v74
    %v76 = vmul.f32 %v71, %v75
    %v77 = vmul.f32 %v69, %v76
    %vm78 = vcmp.eq.f32.partialorder %v69, inf
    %v79 = vsel %vm78, %v69, %v77
    %vm80 = vcmp.eq.f32.partialorder %v69, 0.0
    %v81 = vand.u32 %v69, 2147483648
    %v82 = vsel %vm80, %v81, %v79
    %v83 = vrsqrt.pop %v70
    %v84 = vmul.f32 %v83, %v70
    %v85 = vmul.f32 %v84, %v83
    %v86 = vmul.f32 0.5, %v85
    %v87 = vsub.f32 1.5, %v86
    %v88 = vmul.f32 %v83, %v87
    %v89 = vmul.f32 %v70, %v88
    %vm90 = vcmp.eq.f32.partialorder %v70, inf
    %v91 = vsel %vm90, %v70, %v89
    %vm92 = vcmp.eq.f32.partialorder %v70, 0.0
    %v93 = vand.u32 %v70, 2147483648
    %v94 = vsel %vm92, %v93, %v91
    %v95 = vld [vmem:[#allocation7] sm:$0xff]
    %v96 = vadd.f32 %v82, %v94
    %v97 = vadd.f32 %v95, %v96
    %98 = vst [vmem:[#allocation7] sm:$0xff] %v97
    // Predicated region
    $region22: #{tpu_custom_call.1} parent=1 // pred_check
      _
    $region23: #{tpu_custom_call.1} parent=1 // pred_check_branch
      %100 = sbr.rel (0) target = $region25
    $region24: #{tpu_custom_call.1} parent=1 // pred_region
      %102 = vsyncadd [#allocation4], 0
      %s104 = sshll.u32 [#allocation7], 4
      %s105 = int_to_ptr.vmem [resolvable:$true] %s104
      %s106 = sshll.u32 %s2, 4
      %s107 = int_to_ptr.hbm [resolvable:$true] %s106
      %109 = dma.vmem_to_hbm [thread:$0]  %s105, 128, %s107, [#allocation4]
    $region25: #{tpu_custom_call.1} parent=1 // pred_fallthru
      _
    // Predicated region
    $region26: #{tpu_custom_call.1} parent=1 // pred_check
      _
    $region27: #{tpu_custom_call.1} parent=1 // pred_check_branch
      %111 = sbr.rel (0) target = $region29
    $region28: #{tpu_custom_call.1} parent=1 // pred_region
      %113 = dma.done [#allocation4], 128
    $region29: #{tpu_custom_call.1} parent=1 // pred_fallthru
      _
    %114 = vsyncpa [#allocation3], 1
    %115 = vsyncpa [#allocation6], 1
    %116 = vsyncpa [#allocation4], 1

</llo_original>
